<compile_context>
chip_gen: v7x
topology: tpu7x:2x2x1
jax: 0.10.0
libtpu: 0.0.40
codegen_flags: <defaults>
</compile_context>

<pallas_src>
import jax
import jax.numpy as jnp
from jax.experimental import pallas as pl
from jax.experimental.pallas import tpu as pltpu

_LANE_W = 512                    # slab width: multiple of 128 -> unmasked stores
_TARGET_BLOCK_BYTES = 2 << 20    # ~2 MiB per block; 2 bufs x (in + out) = ~8 MiB VMEM
_MIN_PALLAS_ELEMS = 1 << 20      # below ~1M elems, XLA's fused exp beats launch cost


def _exp_kernel(x_ref, o_ref):
    # Elementwise exp on the current VMEM tile (EUP transcendental).
    o_ref[...] = jnp.exp(x_ref[...])


def exp_pallas(x: jax.Array, *, min_pallas_elems: int = _MIN_PALLAS_ELEMS) -> jax.Array:
    """Elementwise exp.  Pallas TPU kernel for large float inputs, jnp.exp otherwise."""
    n = x.size
    # Small / empty / non-float inputs: plain XLA exp is strictly better.
    if n == 0 or n < min_pallas_elems or not jnp.issubdtype(x.dtype, jnp.floating):
        return jnp.exp(x)

    dtype = x.dtype
    itemsize = jnp.dtype(dtype).itemsize
    # Row tiles stay on the native packed sublane grid (8 f32 / 16 bf16 / 32 fp8).
    sublane = 8 * max(1, 4 // itemsize)
    tr_target = max(
        sublane,
        (_TARGET_BLOCK_BYTES // (_LANE_W * itemsize)) // sublane * sublane,
    )

    flat = jnp.ravel(x)                       # metadata-only for a fresh array
    n_main = (n // _LANE_W) * _LANE_W         # aligned prefix handled by the kernel
    rows = n_main // _LANE_W
    if rows == 0:
        return jnp.exp(x)

    # No padding: zero-copy when aligned; for ragged sizes only the aligned
    # prefix goes through the kernel and the tiny (< 512 elem) tail is finished
    # in XLA.
    x_main = flat if n_main == n else flat[:n_main]
    x2d = x_main.reshape(rows, _LANE_W)

    # Block row-count is either a sublane-aligned tile or the full row extent —
    # both satisfy the (8, 128) BlockSpec rule.  A partial trailing block
    # (rows % tr != 0) is masked by Pallas; harmless for an elementwise op.
    tr = min(tr_target, rows)
    grid = (pl.cdiv(rows, tr),)

    y2d = pl.pallas_call(
        _exp_kernel,
        out_shape=jax.ShapeDtypeStruct((rows, _LANE_W), dtype),
        grid_spec=pltpu.PrefetchScalarGridSpec(
            num_scalar_prefetch=0,
            grid=grid,
            in_specs=[pl.BlockSpec((tr, _LANE_W), lambda i: (i, 0))],
            out_specs=pl.BlockSpec((tr, _LANE_W), lambda i: (i, 0)),
        ),
        compiler_params=pltpu.CompilerParams(
            dimension_semantics=("parallel",),   # megacore sharding on v7x
        ),
    )(x2d)

    y_main = y2d.reshape(-1)
    if n_main == n:
        return y_main.reshape(x.shape)
    # Ragged tail (< _LANE_W elements): finish with plain exp, no full-array pad.
    tail = jnp.exp(flat[n_main:])
    return jnp.concatenate([y_main, tail]).reshape(x.shape)


if __name__ == "__main__":
    key = jax.random.PRNGKey(0)
    k1, k2, k3 = jax.random.split(key, 3)

    # Small activation-shaped tensor consistent with the module's usage.
    # (min_pallas_elems=0 forces the Pallas path so the kernel actually runs.)
    x = jax.random.normal(k1, (2, 4, 16, 16), dtype=jnp.float32)
    y = jax.block_until_ready(exp_pallas(x, min_pallas_elems=0))
    assert y.shape == x.shape and y.dtype == x.dtype
    assert jnp.allclose(y, jnp.exp(x), rtol=1e-6, atol=1e-6), "f32 mismatch vs jnp.exp"

    # Ragged size: aligned prefix through the kernel, tail finished in XLA.
    xr = jax.random.normal(k2, (3, 1000), dtype=jnp.float32)
    yr = jax.block_until_ready(exp_pallas(xr, min_pallas_elems=0))
    assert yr.shape == xr.shape and yr.dtype == xr.dtype
    assert jnp.allclose(yr, jnp.exp(xr), rtol=1e-6, atol=1e-6), "ragged mismatch"

    # bf16 path (packed sublane tile grid).
    xb = jax.random.normal(k3, (64, 1024), dtype=jnp.bfloat16)
    yb = jax.block_until_ready(exp_pallas(xb, min_pallas_elems=0))
    assert yb.shape == xb.shape and yb.dtype == xb.dtype
    assert jnp.allclose(
        yb.astype(jnp.float32), jnp.exp(xb.astype(jnp.float32)), rtol=2e-2, atol=2e-2
    ), "bf16 mismatch"

    print("KERNEL_OK")
</pallas_src>

<mosaic_0001>
module attributes {stable_mosaic.version = 11 : i64} {
  func.func @_exp_kernel(%arg0: i32, %arg1: memref<4x512xf32, #tpu.memory_space<vmem>>, %arg2: memref<4x512xf32, #tpu.memory_space<vmem>>) attributes {dimension_semantics = [#tpu.dimension_semantics<parallel>], iteration_bounds = array<i64: 1>, scalar_prefetch = 0 : i64, scratch_operands = 0 : i64, tpu.core_type = #tpu.core_type<tc>, window_params = [{transform_indices = @transform_0, window_bounds = array<i64: 4, 512>}, {transform_indices = @transform_1, window_bounds = array<i64: 4, 512>}]} {
    %c0 = arith.constant 0 : index
    %c0_0 = arith.constant 0 : index
    %0 = vector.load %arg1[%c0, %c0_0] : memref<4x512xf32, #tpu.memory_space<vmem>>, vector<4x512xf32>
    %1 = math.exp %0 : vector<4x512xf32>
    %c0_1 = arith.constant 0 : index
    %c0_2 = arith.constant 0 : index
    %2 = vector.load %arg2[%c0_1, %c0_2] : memref<4x512xf32, #tpu.memory_space<vmem>>, vector<4x512xf32>
    tpu.vector_store %arg2[%c0_1, %c0_2], %1 {strides = array<i32>} : memref<4x512xf32, #tpu.memory_space<vmem>>, vector<4x512xf32>,
    return
  }
  func.func @transform_0(%arg0: i32) -> (i32, i32) {
    %c0_i32 = arith.constant 0 : i32
    %c0_i32_0 = arith.constant 0 : i32
    return %arg0, %c0_i32 : i32, i32
  }
  func.func @transform_1(%arg0: i32) -> (i32, i32) {
    %c0_i32 = arith.constant 0 : i32
    %c0_i32_0 = arith.constant 0 : i32
    return %arg0, %c0_i32 : i32, i32
  }
}

</mosaic_0001>

<llo_original>
// kernel: tpu_custom_call.1
$region0: #{tpu_custom_call.1}
  #allocation0 [shape = 'u32[]', space=smem, size = 0x4, offset = 0x4, fixed_abs, tag = 'smem constant byte address 0x4 - core index']
  #allocation1 [shape = 'u32[144,128]{1,0:T(1,128)}', space=vmem, size = 0x12000, scoped, tag = 'internal scratch']
  %s0 = inlined_call_operand.hbm [shape: f32[4,512], index: 0, kind: input, shape index: {}]
  %s1 = inlined_call_operand.hbm [shape: f32[4,512], index: 1, kind: output, shape index: {}]
  %s2 = sld [smem:[#allocation0]]
  $region18: #{tpu_custom_call.1} parent=0
    _
  %s4 = ssub.s32 1, %s2
  %s5 = scalar_select 0, %s4, %s2
  $region1: #{tpu_custom_call.1} parent=0
    #allocation2 [shape = 'u8[8192]{0}', space=vmem, size = 0x2000, scoped, tag = 'input window, operand 0, single buffered']
    #allocation3 [shape = 's32[1]{0}', space=sflag, size = 0x4, scoped, tag = 'scoped memory for tpu_custom_call.1']
    #allocation4 [shape = 's32[1]{0}', space=sflag, size = 0x4, scoped, tag = 'scoped memory for tpu_custom_call.1']
    #allocation5 [shape = 'u8[8192]{0}', space=vmem, size = 0x2000, scoped, tag = 'output window, operand 0, single buffered']
    %6 = vsyncpa [#allocation3], 0
    %7 = vsyncpa [#allocation4], 0
    // Predicated region
    $region2: #{tpu_custom_call.1} parent=1 // pred_check
      _
    $region3: #{tpu_custom_call.1} parent=1 // pred_check_branch
      %9 = sbr.rel (0) target = $region5
    $region4: #{tpu_custom_call.1} parent=1 // pred_region
      %s11 = ssub.s32 256, 256
      %12 = vsyncadd [#allocation3], %s11
      %s14 = sshll.u32 [#allocation2], 4
      %s15 = int_to_ptr.vmem [resolvable:$true] %s14
      %17 = dma.hbm_to_vmem [thread:$0]  %s0, 256, %s15, [#allocation3]
    $region5: #{tpu_custom_call.1} parent=1 // pred_fallthru
      _
    // Predicated region
    $region6: #{tpu_custom_call.1} parent=1 // pred_check
      _
    $region7: #{tpu_custom_call.1} parent=1 // pred_check_branch
      %19 = sbr.rel (0) target = $region9
    $region8: #{tpu_custom_call.1} parent=1 // pred_region
      %20 = dma.done [#allocation3], 256
    $region9: #{tpu_custom_call.1} parent=1 // pred_fallthru
      _
    %v21 = vld [vmem:[#allocation2] sm:$0xff]
    %v22 = vld [vmem:[#allocation2 + $0x8] sm:$0xff]
    %v23 = vmul.f32 %v21, 1.442695
    %v24 = vpow.pop %v23
    %v25 = vmul.f32 %v22, 1.442695
    %v26 = vpow.pop %v25
    %27 = vst [vmem:[#allocation5] sm:$0xff] %v24
    %28 = vst [vmem:[#allocation5 + $0x8] sm:$0xff] %v26
    // Predicated region
    $region10: #{tpu_custom_call.1} parent=1 // pred_check
      _
    $region11: #{tpu_custom_call.1} parent=1 // pred_check_branch
      %30 = sbr.rel (0) target = $region13
    $region12: #{tpu_custom_call.1} parent=1 // pred_region
      %s32 = ssub.s32 256, 256
      %33 = vsyncadd [#allocation4], %s32
      %s35 = sshll.u32 [#allocation5], 4
      %s36 = int_to_ptr.vmem [resolvable:$true] %s35
      %38 = dma.vmem_to_hbm [thread:$0]  %s36, 256, %s1, [#allocation4]
    $region13: #{tpu_custom_call.1} parent=1 // pred_fallthru
      _
    // Predicated region
    $region14: #{tpu_custom_call.1} parent=1 // pred_check
      _
    $region15: #{tpu_custom_call.1} parent=1 // pred_check_branch
      %40 = sbr.rel (0) target = $region17
    $region16: #{tpu_custom_call.1} parent=1 // pred_region
      %41 = dma.done [#allocation4], 256
    $region17: #{tpu_custom_call.1} parent=1 // pred_fallthru
      _
    %42 = vsyncpa [#allocation3], 1
    %43 = vsyncpa [#allocation4], 1

</llo_original>
